<compile_context>
chip_gen: v5e
topology: v5e:2x2
jax: 0.10.0
libtpu: 0.0.40
codegen_flags: <defaults>
</compile_context>

<pallas_src>
import jax
import jax.numpy as jnp
from jax.experimental import pallas as pl
from jax.experimental.pallas import tpu as pltpu


def _round_up(x, m):
    return (x + m - 1) // m * m


def _cdiv(a, b):
    return (a + b - 1) // b


# VMEM budget for the double-buffered activation streams (spatial-in,
# temporal-in, fused-out).  24 MiB + tiny weights stays inside the 32 MiB
# scoped default on v6e/v7x; vmem_limit_bytes below covers v5e's 16 MiB
# default and stays well under v7x's 64 MiB physical VMEM per TensorCore.
_ACT_VMEM_BUDGET = 24 * 1024 * 1024
_VMEM_LIMIT_BYTES = 40 * 1024 * 1024


def _st_attention_kernel(
    s_ref, t_ref,                # [TB, S], [TB, T]   activation batch tile
    ps_ref, pt_ref,              # [S, C],  [T, C]    constant 0/1 placement
    w1s_ref, w1t_ref, b1_ref,    # [S, C],  [T, C],  [1, C]
    w2_ref, b2_ref,              # [C, Hp], [1, Hp]
    w3_ref, b3_ref,              # [Hp, C], [1, C]
    w4_ref, b4_ref,              # [C, C],  [1, C]
    out_ref,                     # [TB, C]
):
    s = s_ref[...]
    t = t_ref[...]

    # combined = [spatial | temporal], assembled on the MXU (exact: 0/1
    # matrices) — avoids a lane-unaligned concat, MXU slack is enormous.
    x = (jnp.dot(s, ps_ref[...], preferred_element_type=jnp.float32)
         + jnp.dot(t, pt_ref[...], preferred_element_type=jnp.float32))

    sb = s.astype(jnp.bfloat16)
    tb = t.astype(jnp.bfloat16)

    # fc1 + relu, split across the concat boundary:
    #   combined @ W1 == spatial @ W1[:S] + temporal @ W1[S:]
    h = (jnp.dot(sb, w1s_ref[...], preferred_element_type=jnp.float32)
         + jnp.dot(tb, w1t_ref[...], preferred_element_type=jnp.float32)
         + b1_ref[...])
    h = jnp.maximum(h, 0.0)

    # fc2 + relu (zero-padded bottleneck columns stay exactly 0 after relu).
    h = jnp.dot(h.astype(jnp.bfloat16), w2_ref[...],
                preferred_element_type=jnp.float32) + b2_ref[...]
    h = jnp.maximum(h, 0.0)

    # fc3 + relu
    h = jnp.dot(h.astype(jnp.bfloat16), w3_ref[...],
                preferred_element_type=jnp.float32) + b3_ref[...]
    h = jnp.maximum(h, 0.0)

    # fc4 + sigmoid via the single-EUP tanh identity (exact, one transcendental).
    logits = jnp.dot(h.astype(jnp.bfloat16), w4_ref[...],
                     preferred_element_type=jnp.float32) + b4_ref[...]
    attn = 0.5 * (jnp.tanh(0.5 * logits) + 1.0)

    # fused_features = combined_feat * attention_weights
    out_ref[...] = (x * attn).astype(out_ref.dtype)


def spatio_temporal_attention(spatial_feat, temporal_feat, params, *, batch_tile=8192):
    """spatial_feat: [B, S], temporal_feat: [B, T] -> fused features [B, S+T]."""
    B, S = spatial_feat.shape
    Bt, T = temporal_feat.shape
    assert B == Bt, "spatial/temporal batch mismatch"
    C = S + T

    w1, b1, w2, b2, w3, b3, w4, b4 = params
    Hp = w2.shape[1]

    # bf16 matmul operands (f32 accumulation in-kernel); biases and the
    # placement matrices stay f32 for exactness of the gating path.
    w1s = w1[:S, :].astype(jnp.bfloat16)
    w1t = w1[S:, :].astype(jnp.bfloat16)
    w2c = w2.astype(jnp.bfloat16)
    w3c = w3.astype(jnp.bfloat16)
    w4c = w4.astype(jnp.bfloat16)

    eye = jnp.eye(C, dtype=jnp.float32)
    ps, pt = eye[:S, :], eye[S:, :]

    # ---- batch tile selection --------------------------------------------
    itemsize = jnp.dtype(spatial_feat.dtype).itemsize
    lane = lambda d: _round_up(d, 128)
    # double-buffered VMEM bytes per batch row for the 3 activation streams
    row_bytes = 2 * (lane(S) + lane(T) + lane(C)) * itemsize
    tb_vmem_cap = max(8, (_ACT_VMEM_BUDGET // row_bytes) // 8 * 8)

    b8 = _round_up(B, 8)
    tb = min(max(8, batch_tile // 8 * 8), tb_vmem_cap, b8)
    # v7x megacore: keep >= 2 grid steps once the batch is big enough that
    # splitting it does not hurt per-step-overhead amortization.
    if b8 >= 2048:
        tb = min(tb, _round_up(_cdiv(b8, 2), 8))
    TB = max(8, tb)
    num_steps = _cdiv(B, TB)

    act_kwargs = {}
    if TB <= 2048 and num_steps >= 2:
        # Small tiles (tiny-batch / latency cases): deepen the pipeline so the
        # per-tile DMA latency stays hidden behind compute + step overhead.
        act_kwargs = dict(pipeline_mode=pl.Buffered(3))

    s_spec = pl.BlockSpec((TB, S), lambda i: (i, 0), **act_kwargs)
    t_spec = pl.BlockSpec((TB, T), lambda i: (i, 0), **act_kwargs)
    o_spec = pl.BlockSpec((TB, C), lambda i: (i, 0))

    def resident(shape):
        # Same block every grid step -> stays VMEM-resident across the loop.
        return pl.BlockSpec(shape, lambda i: (0, 0))

    w_bytes = sum(int(a.size) * jnp.dtype(a.dtype).itemsize
                  for a in (ps, pt, w1s, w1t, b1, w2c, b2, w3c, b3, w4c, b4))
    flops = 2 * B * (3 * C * C + 2 * C * Hp) + 10 * B * C
    bytes_accessed = B * (S + T + C) * itemsize + w_bytes

    out = pl.pallas_call(
        _st_attention_kernel,
        out_shape=jax.ShapeDtypeStruct((B, C), spatial_feat.dtype),
        grid=(num_steps,),
        in_specs=[
            s_spec, t_spec,
            resident((S, C)), resident((T, C)),          # placement matrices
            resident((S, C)), resident((T, C)), resident((1, C)),   # fc1
            resident((C, Hp)), resident((1, Hp)),                   # fc2
            resident((Hp, C)), resident((1, C)),                    # fc3
            resident((C, C)), resident((1, C)),                     # fc4
        ],
        out_specs=o_spec,
        compiler_params=pltpu.CompilerParams(
            dimension_semantics=("parallel",),
            vmem_limit_bytes=_VMEM_LIMIT_BYTES,
        ),
        cost_estimate=pl.CostEstimate(
            flops=flops,
            transcendentals=B * C,          # one tanh per output element
            bytes_accessed=bytes_accessed,
        ),
    )(spatial_feat, temporal_feat, ps, pt,
      w1s, w1t, b1, w2c, b2, w3c, b3, w4c, b4)
    return out


def init_params(key, spatial_feature_size, temporal_feature_size, dtype=jnp.float32):
    """nn.Linear-style init.  Weights stored [in, out] (transposed vs torch),
    biases as [1, out].  The C//8 bottleneck is zero-padded to a multiple of 8
    (numerically identical because relu(0) = 0)."""
    C = spatial_feature_size + temporal_feature_size
    if C < 8:
        raise ValueError(
            f"concat_size must be >= 8 (fc2 bottleneck is concat_size // 8), got {C}")
    H = C // 8
    Hp = _round_up(max(H, 8), 8)
    keys = jax.random.split(key, 8)

    def linear(kw, kb, fan_in, fan_out):
        bound = 1.0 / float(fan_in) ** 0.5
        w = jax.random.uniform(kw, (fan_in, fan_out), dtype, -bound, bound)
        b = jax.random.uniform(kb, (1, fan_out), dtype, -bound, bound)
        return w, b

    w1, b1 = linear(keys[0], keys[1], C, C)
    w2, b2 = linear(keys[2], keys[3], C, H)
    w3, b3 = linear(keys[4], keys[5], H, C)
    w4, b4 = linear(keys[6], keys[7], C, C)

    # Zero-pad the bottleneck: extra fc2 output columns are 0 (+0 bias, relu
    # keeps them 0) and the matching fc3 input rows are 0 (contribute nothing).
    w2 = jnp.pad(w2, ((0, 0), (0, Hp - H)))
    b2 = jnp.pad(b2, ((0, 0), (0, Hp - H)))
    w3 = jnp.pad(w3, ((0, Hp - H), (0, 0)))
    return (w1, b1, w2, b2, w3, b3, w4, b4)


def _reference(spatial_feat, temporal_feat, params):
    w1, b1, w2, b2, w3, b3, w4, b4 = params
    combined = jnp.concatenate([spatial_feat, temporal_feat], axis=1)
    x = jax.nn.relu(combined @ w1 + b1)
    x = jax.nn.relu(x @ w2 + b2)
    x = jax.nn.relu(x @ w3 + b3)
    attn = jax.nn.sigmoid(x @ w4 + b4)
    return combined * attn


if __name__ == "__main__":
    # Small shapes consistent with the module: concat_size = 32 (divisible by 8).
    batch = 8
    spatial_feature_size = 24
    temporal_feature_size = 8

    key = jax.random.PRNGKey(0)
    k_s, k_t, k_p = jax.random.split(key, 3)

    spatial_feat = jax.random.normal(k_s, (batch, spatial_feature_size), jnp.float32)
    temporal_feat = jax.random.normal(k_t, (batch, temporal_feature_size), jnp.float32)
    params = init_params(k_p, spatial_feature_size, temporal_feature_size)

    out = spatio_temporal_attention(spatial_feat, temporal_feat, params)
    out = jax.block_until_ready(out)

    ref = _reference(spatial_feat, temporal_feat, params)
    assert out.shape == ref.shape
    # bf16 matmul operands (f32 accumulation) cost ~1e-3-scale absolute error.
    assert jnp.allclose(out, ref, atol=2e-2, rtol=2e-2), "mismatch vs JAX reference"

    print("KERNEL_OK")
</pallas_src>

<mosaic_0001>
module attributes {stable_mosaic.version = 11 : i64} {
  func.func @_st_attention_kernel(%arg0: i32, %arg1: memref<8x24xf32, #tpu.memory_space<vmem>>, %arg2: memref<8x8xf32, #tpu.memory_space<vmem>>, %arg3: memref<24x32xf32, #tpu.memory_space<vmem>>, %arg4: memref<8x32xf32, #tpu.memory_space<vmem>>, %arg5: memref<24x32xbf16, #tpu.memory_space<vmem>>, %arg6: memref<8x32xbf16, #tpu.memory_space<vmem>>, %arg7: memref<1x32xf32, #tpu.memory_space<vmem>>, %arg8: memref<32x8xbf16, #tpu.memory_space<vmem>>, %arg9: memref<1x8xf32, #tpu.memory_space<vmem>>, %arg10: memref<8x32xbf16, #tpu.memory_space<vmem>>, %arg11: memref<1x32xf32, #tpu.memory_space<vmem>>, %arg12: memref<32x32xbf16, #tpu.memory_space<vmem>>, %arg13: memref<1x32xf32, #tpu.memory_space<vmem>>, %arg14: memref<8x32xf32, #tpu.memory_space<vmem>>) attributes {dimension_semantics = [#tpu.dimension_semantics<parallel>], iteration_bounds = array<i64: 1>, scalar_prefetch = 0 : i64, scratch_operands = 0 : i64, tpu.core_type = #tpu.core_type<tc>, window_params = [{transform_indices = @transform_0, window_bounds = array<i64: 8, 24>}, {transform_indices = @transform_1, window_bounds = array<i64: 8, 8>}, {pipeline_mode = #tpu.pipeline_mode<synchronous>, transform_indices = @transform_2, window_bounds = array<i64: 24, 32>}, {pipeline_mode = #tpu.pipeline_mode<synchronous>, transform_indices = @transform_3, window_bounds = array<i64: 8, 32>}, {pipeline_mode = #tpu.pipeline_mode<synchronous>, transform_indices = @transform_4, window_bounds = array<i64: 24, 32>}, {pipeline_mode = #tpu.pipeline_mode<synchronous>, transform_indices = @transform_5, window_bounds = array<i64: 8, 32>}, {pipeline_mode = #tpu.pipeline_mode<synchronous>, transform_indices = @transform_6, window_bounds = array<i64: 1, 32>}, {pipeline_mode = #tpu.pipeline_mode<synchronous>, transform_indices = @transform_7, window_bounds = array<i64: 32, 8>}, {pipeline_mode = #tpu.pipeline_mode<synchronous>, transform_indices = @transform_8, window_bounds = array<i64: 1, 8>}, {pipeline_mode = #tpu.pipeline_mode<synchronous>, transform_indices = @transform_9, window_bounds = array<i64: 8, 32>}, {pipeline_mode = #tpu.pipeline_mode<synchronous>, transform_indices = @transform_10, window_bounds = array<i64: 1, 32>}, {pipeline_mode = #tpu.pipeline_mode<synchronous>, transform_indices = @transform_11, window_bounds = array<i64: 32, 32>}, {pipeline_mode = #tpu.pipeline_mode<synchronous>, transform_indices = @transform_12, window_bounds = array<i64: 1, 32>}, {transform_indices = @transform_13, window_bounds = array<i64: 8, 32>}]} {
    %c0 = arith.constant 0 : index
    %c0_0 = arith.constant 0 : index
    %0 = vector.load %arg1[%c0, %c0_0] : memref<8x24xf32, #tpu.memory_space<vmem>>, vector<8x24xf32>
    %c0_1 = arith.constant 0 : index
    %c0_2 = arith.constant 0 : index
    %1 = vector.load %arg2[%c0_1, %c0_2] : memref<8x8xf32, #tpu.memory_space<vmem>>, vector<8x8xf32>
    %c0_3 = arith.constant 0 : index
    %c0_4 = arith.constant 0 : index
    %2 = vector.load %arg3[%c0_3, %c0_4] : memref<24x32xf32, #tpu.memory_space<vmem>>, vector<24x32xf32>
    %cst = arith.constant dense<0.000000e+00> : vector<8x32xf32>
    %3 = tpu.matmul %0, %2, %cst {dimension_numbers = #tpu.dot_dimension_numbers<[1], [0], [0], [1], [0, 0, 1, 1], [], []>} : vector<8x24xf32>, vector<24x32xf32>, vector<8x32xf32> -> vector<8x32xf32>
    %c0_5 = arith.constant 0 : index
    %c0_6 = arith.constant 0 : index
    %4 = vector.load %arg4[%c0_5, %c0_6] : memref<8x32xf32, #tpu.memory_space<vmem>>, vector<8x32xf32>
    %cst_7 = arith.constant dense<0.000000e+00> : vector<8x32xf32>
    %5 = tpu.matmul %1, %4, %cst_7 {dimension_numbers = #tpu.dot_dimension_numbers<[1], [0], [0], [1], [0, 0, 1, 1], [], []>} : vector<8x8xf32>, vector<8x32xf32>, vector<8x32xf32> -> vector<8x32xf32>
    %6 = arith.addf %3, %5 : vector<8x32xf32>
    %7 = arith.truncf %0 : vector<8x24xf32> to vector<8x24xbf16>
    %8 = arith.truncf %1 : vector<8x8xf32> to vector<8x8xbf16>
    %c0_8 = arith.constant 0 : index
    %c0_9 = arith.constant 0 : index
    %9 = vector.load %arg5[%c0_8, %c0_9] : memref<24x32xbf16, #tpu.memory_space<vmem>>, vector<24x32xbf16>
    %cst_10 = arith.constant dense<0.000000e+00> : vector<8x32xf32>
    %10 = tpu.matmul %7, %9, %cst_10 {dimension_numbers = #tpu.dot_dimension_numbers<[1], [0], [0], [1], [0, 0, 1, 1], [], []>} : vector<8x24xbf16>, vector<24x32xbf16>, vector<8x32xf32> -> vector<8x32xf32>
    %c0_11 = arith.constant 0 : index
    %c0_12 = arith.constant 0 : index
    %11 = vector.load %arg6[%c0_11, %c0_12] : memref<8x32xbf16, #tpu.memory_space<vmem>>, vector<8x32xbf16>
    %cst_13 = arith.constant dense<0.000000e+00> : vector<8x32xf32>
    %12 = tpu.matmul %8, %11, %cst_13 {dimension_numbers = #tpu.dot_dimension_numbers<[1], [0], [0], [1], [0, 0, 1, 1], [], []>} : vector<8x8xbf16>, vector<8x32xbf16>, vector<8x32xf32> -> vector<8x32xf32>
    %13 = arith.addf %10, %12 : vector<8x32xf32>
    %c0_14 = arith.constant 0 : index
    %c0_15 = arith.constant 0 : index
    %14 = vector.load %arg7[%c0_14, %c0_15] : memref<1x32xf32, #tpu.memory_space<vmem>>, vector<1x32xf32>
    %15 = vector.broadcast %14 : vector<1x32xf32> to vector<8x32xf32>
    %16 = arith.addf %13, %15 : vector<8x32xf32>
    %cst_16 = arith.constant 0.000000e+00 : f32
    %17 = vector.broadcast %cst_16 : f32 to vector<8x32xf32>
    %18 = arith.maximumf %16, %17 : vector<8x32xf32>
    %19 = arith.truncf %18 : vector<8x32xf32> to vector<8x32xbf16>
    %c0_17 = arith.constant 0 : index
    %c0_18 = arith.constant 0 : index
    %20 = vector.load %arg8[%c0_17, %c0_18] : memref<32x8xbf16, #tpu.memory_space<vmem>>, vector<32x8xbf16>
    %cst_19 = arith.constant dense<0.000000e+00> : vector<8x8xf32>
    %21 = tpu.matmul %19, %20, %cst_19 {dimension_numbers = #tpu.dot_dimension_numbers<[1], [0], [0], [1], [0, 0, 1, 1], [], []>} : vector<8x32xbf16>, vector<32x8xbf16>, vector<8x8xf32> -> vector<8x8xf32>
    %c0_20 = arith.constant 0 : index
    %c0_21 = arith.constant 0 : index
    %22 = vector.load %arg9[%c0_20, %c0_21] : memref<1x8xf32, #tpu.memory_space<vmem>>, vector<1x8xf32>
    %23 = vector.broadcast %22 : vector<1x8xf32> to vector<8x8xf32>
    %24 = arith.addf %21, %23 : vector<8x8xf32>
    %cst_22 = arith.constant 0.000000e+00 : f32
    %25 = vector.broadcast %cst_22 : f32 to vector<8x8xf32>
    %26 = arith.maximumf %24, %25 : vector<8x8xf32>
    %27 = arith.truncf %26 : vector<8x8xf32> to vector<8x8xbf16>
    %c0_23 = arith.constant 0 : index
    %c0_24 = arith.constant 0 : index
    %28 = vector.load %arg10[%c0_23, %c0_24] : memref<8x32xbf16, #tpu.memory_space<vmem>>, vector<8x32xbf16>
    %cst_25 = arith.constant dense<0.000000e+00> : vector<8x32xf32>
    %29 = tpu.matmul %27, %28, %cst_25 {dimension_numbers = #tpu.dot_dimension_numbers<[1], [0], [0], [1], [0, 0, 1, 1], [], []>} : vector<8x8xbf16>, vector<8x32xbf16>, vector<8x32xf32> -> vector<8x32xf32>
    %c0_26 = arith.constant 0 : index
    %c0_27 = arith.constant 0 : index
    %30 = vector.load %arg11[%c0_26, %c0_27] : memref<1x32xf32, #tpu.memory_space<vmem>>, vector<1x32xf32>
    %31 = vector.broadcast %30 : vector<1x32xf32> to vector<8x32xf32>
    %32 = arith.addf %29, %31 : vector<8x32xf32>
    %cst_28 = arith.constant 0.000000e+00 : f32
    %33 = vector.broadcast %cst_28 : f32 to vector<8x32xf32>
    %34 = arith.maximumf %32, %33 : vector<8x32xf32>
    %35 = arith.truncf %34 : vector<8x32xf32> to vector<8x32xbf16>
    %c0_29 = arith.constant 0 : index
    %c0_30 = arith.constant 0 : index
    %36 = vector.load %arg12[%c0_29, %c0_30] : memref<32x32xbf16, #tpu.memory_space<vmem>>, vector<32x32xbf16>
    %cst_31 = arith.constant dense<0.000000e+00> : vector<8x32xf32>
    %37 = tpu.matmul %35, %36, %cst_31 {dimension_numbers = #tpu.dot_dimension_numbers<[1], [0], [0], [1], [0, 0, 1, 1], [], []>} : vector<8x32xbf16>, vector<32x32xbf16>, vector<8x32xf32> -> vector<8x32xf32>
    %c0_32 = arith.constant 0 : index
    %c0_33 = arith.constant 0 : index
    %38 = vector.load %arg13[%c0_32, %c0_33] : memref<1x32xf32, #tpu.memory_space<vmem>>, vector<1x32xf32>
    %39 = vector.broadcast %38 : vector<1x32xf32> to vector<8x32xf32>
    %40 = arith.addf %37, %39 : vector<8x32xf32>
    %cst_34 = arith.constant 5.000000e-01 : f32
    %41 = vector.broadcast %cst_34 : f32 to vector<8x32xf32>
    %42 = arith.mulf %41, %40 : vector<8x32xf32>
    %43 = math.tanh %42 : vector<8x32xf32>
    %cst_35 = arith.constant 1.000000e+00 : f32
    %44 = vector.broadcast %cst_35 : f32 to vector<8x32xf32>
    %45 = arith.addf %43, %44 : vector<8x32xf32>
    %cst_36 = arith.constant 5.000000e-01 : f32
    %46 = vector.broadcast %cst_36 : f32 to vector<8x32xf32>
    %47 = arith.mulf %46, %45 : vector<8x32xf32>
    %48 = arith.mulf %6, %47 : vector<8x32xf32>
    %c0_37 = arith.constant 0 : index
    %c0_38 = arith.constant 0 : index
    %49 = vector.load %arg14[%c0_37, %c0_38] : memref<8x32xf32, #tpu.memory_space<vmem>>, vector<8x32xf32>
    tpu.vector_store %arg14[%c0_37, %c0_38], %48 {strides = array<i32>} : memref<8x32xf32, #tpu.memory_space<vmem>>, vector<8x32xf32>,
    return
  }
  func.func @transform_0(%arg0: i32) -> (i32, i32) {
    %c0_i32 = arith.constant 0 : i32
    %c0_i32_0 = arith.constant 0 : i32
    return %arg0, %c0_i32 : i32, i32
  }
  func.func @transform_1(%arg0: i32) -> (i32, i32) {
    %c0_i32 = arith.constant 0 : i32
    %c0_i32_0 = arith.constant 0 : i32
    return %arg0, %c0_i32 : i32, i32
  }
  func.func @transform_2(%arg0: i32) -> (i32, i32) {
    %c0_i32 = arith.constant 0 : i32
    %c0_i32_0 = arith.constant 0 : i32
    %c0_i32_1 = arith.constant 0 : i32
    return %c0_i32, %c0_i32_0 : i32, i32
  }
  func.func @transform_3(%arg0: i32) -> (i32, i32) {
    %c0_i32 = arith.constant 0 : i32
    %c0_i32_0 = arith.constant 0 : i32
    %c0_i32_1 = arith.constant 0 : i32
    return %c0_i32, %c0_i32_0 : i32, i32
  }
  func.func @transform_4(%arg0: i32) -> (i32, i32) {
    %c0_i32 = arith.constant 0 : i32
    %c0_i32_0 = arith.constant 0 : i32
    %c0_i32_1 = arith.constant 0 : i32
    return %c0_i32, %c0_i32_0 : i32, i32
  }
  func.func @transform_5(%arg0: i32) -> (i32, i32) {
    %c0_i32 = arith.constant 0 : i32
    %c0_i32_0 = arith.constant 0 : i32
    %c0_i32_1 = arith.constant 0 : i32
    return %c0_i32, %c0_i32_0 : i32, i32
  }
  func.func @transform_6(%arg0: i32) -> (i32, i32) {
    %c0_i32 = arith.constant 0 : i32
    %c0_i32_0 = arith.constant 0 : i32
    %c0_i32_1 = arith.constant 0 : i32
    return %c0_i32, %c0_i32_0 : i32, i32
  }
  func.func @transform_7(%arg0: i32) -> (i32, i32) {
    %c0_i32 = arith.constant 0 : i32
    %c0_i32_0 = arith.constant 0 : i32
    %c0_i32_1 = arith.constant 0 : i32
    return %c0_i32, %c0_i32_0 : i32, i32
  }
  func.func @transform_8(%arg0: i32) -> (i32, i32) {
    %c0_i32 = arith.constant 0 : i32
    %c0_i32_0 = arith.constant 0 : i32
    %c0_i32_1 = arith.constant 0 : i32
    return %c0_i32, %c0_i32_0 : i32, i32
  }
  func.func @transform_9(%arg0: i32) -> (i32, i32) {
    %c0_i32 = arith.constant 0 : i32
    %c0_i32_0 = arith.constant 0 : i32
    %c0_i32_1 = arith.constant 0 : i32
    return %c0_i32, %c0_i32_0 : i32, i32
  }
  func.func @transform_10(%arg0: i32) -> (i32, i32) {
    %c0_i32 = arith.constant 0 : i32
    %c0_i32_0 = arith.constant 0 : i32
    %c0_i32_1 = arith.constant 0 : i32
    return %c0_i32, %c0_i32_0 : i32, i32
  }
  func.func @transform_11(%arg0: i32) -> (i32, i32) {
    %c0_i32 = arith.constant 0 : i32
    %c0_i32_0 = arith.constant 0 : i32
    %c0_i32_1 = arith.constant 0 : i32
    return %c0_i32, %c0_i32_0 : i32, i32
  }
  func.func @transform_12(%arg0: i32) -> (i32, i32) {
    %c0_i32 = arith.constant 0 : i32
    %c0_i32_0 = arith.constant 0 : i32
    %c0_i32_1 = arith.constant 0 : i32
    return %c0_i32, %c0_i32_0 : i32, i32
  }
  func.func @transform_13(%arg0: i32) -> (i32, i32) {
    %c0_i32 = arith.constant 0 : i32
    %c0_i32_0 = arith.constant 0 : i32
    return %arg0, %c0_i32 : i32, i32
  }
}

</mosaic_0001>

<llo_original>
// kernel: tpu_custom_call.1
$region0: #{tpu_custom_call.1}
  #allocation0 [shape = 'u32[]', space=smem, size = 0x4, offset = 0x4, fixed_abs, tag = 'smem constant byte address 0x4 - core index']
  #allocation1 [shape = 'u32[72,128]{1,0:T(1,128)}', space=vmem, size = 0x9000, scoped, tag = 'internal scratch']
  %s0 = inlined_call_operand.hbm [shape: f32[8,24], index: 0, kind: input, shape index: {}]
  %s1 = inlined_call_operand.hbm [shape: f32[8,8], index: 1, kind: input, shape index: {}]
  %s2 = inlined_call_operand.hbm [shape: f32[24,32], index: 2, kind: input, shape index: {}]
  %s3 = inlined_call_operand.hbm [shape: f32[8,32], index: 3, kind: input, shape index: {}]
  %s4 = inlined_call_operand.vmem [shape: bf16[24,32], index: 4, kind: input, shape index: {}]
  %s5 = inlined_call_operand.hbm [shape: bf16[8,32], index: 5, kind: input, shape index: {}]
  %s6 = inlined_call_operand.vmem [shape: f32[1,32], index: 6, kind: input, shape index: {}]
  %s7 = inlined_call_operand.vmem [shape: bf16[32,8], index: 7, kind: input, shape index: {}]
  %s8 = inlined_call_operand.vmem [shape: f32[1,8], index: 8, kind: input, shape index: {}]
  %s9 = inlined_call_operand.hbm [shape: bf16[8,32], index: 9, kind: input, shape index: {}]
  %s10 = inlined_call_operand.hbm [shape: f32[1,32], index: 10, kind: input, shape index: {}]
  %s11 = inlined_call_operand.vmem [shape: bf16[32,32], index: 11, kind: input, shape index: {}]
  %s12 = inlined_call_operand.vmem [shape: f32[1,32], index: 12, kind: input, shape index: {}]
  %s13 = inlined_call_operand.hbm [shape: f32[8,32], index: 13, kind: output, shape index: {}]
  %s14 = sld [smem:[#allocation0]]
  $region90: #{tpu_custom_call.1} parent=0
    _
  %s16 = ssub.s32 1, %s14
  %s17 = scalar_select 0, %s16, %s14
  $region1: #{tpu_custom_call.1} parent=0
    #allocation2 [shape = 'u8[4096]{0}', space=vmem, size = 0x1000, scoped, tag = 'input window, operand 0, single buffered']
    #allocation3 [shape = 's32[1]{0}', space=sflag, size = 0x4, scoped, tag = 'scoped memory for tpu_custom_call.1']
    #allocation4 [shape = 's32[1]{0}', space=sflag, size = 0x4, scoped, tag = 'scoped memory for tpu_custom_call.1']
    #allocation5 [shape = 'u8[4096]{0}', space=vmem, size = 0x1000, scoped, tag = 'input window, operand 1, single buffered']
    #allocation6 [shape = 's32[1]{0}', space=sflag, size = 0x4, scoped, tag = 'scoped memory for tpu_custom_call.1']
    #allocation7 [shape = 'u8[12288]{0}', space=vmem, size = 0x3000, scoped, tag = 'input window, operand 2, single buffered']
    #allocation8 [shape = 'u8[4096]{0}', space=vmem, size = 0x1000, scoped, tag = 'input window, operand 3, single buffered']
    #allocation9 [shape = 's32[1]{0}', space=sflag, size = 0x4, scoped, tag = 'scoped memory for tpu_custom_call.1']
    #allocation10 [shape = 'u8[2048]{0}', space=vmem, size = 0x800, scoped, tag = 'input window, operand 5, single buffered']
    #allocation11 [shape = 'u8[2048]{0}', space=vmem, size = 0x800, scoped, tag = 'input window, operand 9, single buffered']
    #allocation12 [shape = 's32[1]{0}', space=sflag, size = 0x4, scoped, tag = 'scoped memory for tpu_custom_call.1']
    #allocation13 [shape = 'u8[512]{0}', space=vmem, size = 0x400, scoped, tag = 'input window, operand 10, single buffered']
    #allocation14 [shape = 'u8[4096]{0}', space=vmem, size = 0x1000, scoped, tag = 'output window, operand 0, single buffered']
    %18 = vsyncpa [#allocation3], 0
    %19 = vsyncpa [#allocation6], 0
    %20 = vsyncpa [#allocation9], 0
    %21 = vsyncpa [#allocation12], 0
    %22 = vsyncpa [#allocation4], 0
    // Predicated region
    $region2: #{tpu_custom_call.1} parent=1 // pred_check
      _
    $region3: #{tpu_custom_call.1} parent=1 // pred_check_branch
      %24 = sbr.rel (0) target = $region5
    $region4: #{tpu_custom_call.1} parent=1 // pred_region
      %26 = vsyncadd [#allocation3], 0
      %s28 = sshll.u32 %s0, 4
      %s29 = int_to_ptr.hbm [resolvable:$true] %s28
      %s30 = sshll.u32 [#allocation2], 4
      %s31 = int_to_ptr.vmem [resolvable:$true] %s30
      %33 = dma.hbm_to_vmem [thread:$0]  %s29, 128, %s31, [#allocation3]
    $region5: #{tpu_custom_call.1} parent=1 // pred_fallthru
      _
    // Predicated region
    $region6: #{tpu_custom_call.1} parent=1 // pred_check
      _
    $region7: #{tpu_custom_call.1} parent=1 // pred_check_branch
      %35 = sbr.rel (0) target = $region9
    $region8: #{tpu_custom_call.1} parent=1 // pred_region
      %37 = vsyncadd [#allocation6], 0
      %s39 = sshll.u32 %s1, 4
      %s40 = int_to_ptr.hbm [resolvable:$true] %s39
      %s41 = sshll.u32 [#allocation5], 4
      %s42 = int_to_ptr.vmem [resolvable:$true] %s41
      %44 = dma.hbm_to_vmem [thread:$0]  %s40, 128, %s42, [#allocation6]
    $region9: #{tpu_custom_call.1} parent=1 // pred_fallthru
      _
    // Predicated region
    $region10: #{tpu_custom_call.1} parent=1 // pred_check
      _
    $region11: #{tpu_custom_call.1} parent=1 // pred_check_branch
      %46 = sbr.rel (0) target = $region13
    $region12: #{tpu_custom_call.1} parent=1 // pred_region
      %48 = vsyncadd [#allocation6], 0
      %s49 = sshll.u32 %s2, 4
      %s50 = int_to_ptr.hbm [resolvable:$true] %s49
      %s51 = sshll.u32 [#allocation7], 4
      %s52 = int_to_ptr.vmem [resolvable:$true] %s51
      %57 = dma.hbm_to_vmem [thread:$0]  %s50, 384, %s52, [#allocation6], 128, 128, 8
    $region13: #{tpu_custom_call.1} parent=1 // pred_fallthru
      _
    // Predicated region
    $region14: #{tpu_custom_call.1} parent=1 // pred_check
      _
    $region15: #{tpu_custom_call.1} parent=1 // pred_check_branch
      %59 = sbr.rel (0) target = $region17
    $region16: #{tpu_custom_call.1} parent=1 // pred_region
      %61 = vsyncadd [#allocation9], 0
      %s63 = sshll.u32 %s3, 4
      %s64 = int_to_ptr.hbm [resolvable:$true] %s63
      %s65 = sshll.u32 [#allocation8], 4
      %s66 = int_to_ptr.vmem [resolvable:$true] %s65
      %68 = dma.hbm_to_vmem [thread:$0]  %s64, 128, %s66, [#allocation9]
    $region17: #{tpu_custom_call.1} parent=1 // pred_fallthru
      _
    // Predicated region
    $region18: #{tpu_custom_call.1} parent=1 // pred_check
      _
    $region19: #{tpu_custom_call.1} parent=1 // pred_check_branch
      %70 = sbr.rel (0) target = $region21
    $region20: #{tpu_custom_call.1} parent=1 // pred_region
      _
    $region21: #{tpu_custom_call.1} parent=1 // pred_fallthru
      _
    // Predicated region
    $region22: #{tpu_custom_call.1} parent=1 // pred_check
      _
    $region23: #{tpu_custom_call.1} parent=1 // pred_check_branch
      %72 = sbr.rel (0) target = $region25
    $region24: #{tpu_custom_call.1} parent=1 // pred_region
      %74 = vsyncadd [#allocation9], 0
      %s76 = sshll.u32 %s5, 4
      %s77 = int_to_ptr.hbm [resolvable:$true] %s76
      %s78 = sshll.u32 [#allocation10], 4
      %s79 = int_to_ptr.vmem [resolvable:$true] %s78
      %81 = dma.hbm_to_vmem [thread:$0]  %s77, 64, %s79, [#allocation9]
    $region25: #{tpu_custom_call.1} parent=1 // pred_fallthru
      _
    // Predicated region
    $region26: #{tpu_custom_call.1} parent=1 // pred_check
      _
    $region27: #{tpu_custom_call.1} parent=1 // pred_check_branch
      %83 = sbr.rel (0) target = $region29
    $region28: #{tpu_custom_call.1} parent=1 // pred_region
      _
    $region29: #{tpu_custom_call.1} parent=1 // pred_fallthru
      _
    // Predicated region
    $region30: #{tpu_custom_call.1} parent=1 // pred_check
      _
    $region31: #{tpu_custom_call.1} parent=1 // pred_check_branch
      %85 = sbr.rel (0) target = $region33
    $region32: #{tpu_custom_call.1} parent=1 // pred_region
      _
    $region33: #{tpu_custom_call.1} parent=1 // pred_fallthru
      _
    // Predicated region
    $region34: #{tpu_custom_call.1} parent=1 // pred_check
      _
    $region35: #{tpu_custom_call.1} parent=1 // pred_check_branch
      %87 = sbr.rel (0) target = $region37
    $region36: #{tpu_custom_call.1} parent=1 // pred_region
      _
    $region37: #{tpu_custom_call.1} parent=1 // pred_fallthru
      _
    // Predicated region
    $region38: #{tpu_custom_call.1} parent=1 // pred_check
      _
    $region39: #{tpu_custom_call.1} parent=1 // pred_check_branch
      %89 = sbr.rel (0) target = $region41
    $region40: #{tpu_custom_call.1} parent=1 // pred_region
      %91 = vsyncadd [#allocation12], 0
      %s93 = sshll.u32 %s9, 4
      %s94 = int_to_ptr.hbm [resolvable:$true] %s93
      %s95 = sshll.u32 [#allocation11], 4
      %s96 = int_to_ptr.vmem [resolvable:$true] %s95
      %98 = dma.hbm_to_vmem [thread:$0]  %s94, 64, %s96, [#allocation12]
    $region41: #{tpu_custom_call.1} parent=1 // pred_fallthru
      _
    // Predicated region
    $region42: #{tpu_custom_call.1} parent=1 // pred_check
      _
    $region43: #{tpu_custom_call.1} parent=1 // pred_check_branch
      %100 = sbr.rel (0) target = $region45
    $region44: #{tpu_custom_call.1} parent=1 // pred_region
      %102 = vsyncadd [#allocation12], 0
      %s104 = sshll.u32 %s10, 4
      %s105 = int_to_ptr.hbm [resolvable:$true] %s104
      %s106 = sshll.u32 [#allocation13], 4
      %s107 = int_to_ptr.vmem [resolvable:$true] %s106
      %109 = dma.hbm_to_vmem [thread:$0]  %s105, 16, %s107, [#allocation12]
    $region45: #{tpu_custom_call.1} parent=1 // pred_fallthru
      _
    // Predicated region
    $region46: #{tpu_custom_call.1} parent=1 // pred_check
      _
    $region47: #{tpu_custom_call.1} parent=1 // pred_check_branch
      %111 = sbr.rel (0) target = $region49
    $region48: #{tpu_custom_call.1} parent=1 // pred_region
      _
    $region49: #{tpu_custom_call.1} parent=1 // pred_fallthru
      _
    // Predicated region
    $region50: #{tpu_custom_call.1} parent=1 // pred_check
      _
    $region51: #{tpu_custom_call.1} parent=1 // pred_check_branch
      %113 = sbr.rel (0) target = $region53
    $region52: #{tpu_custom_call.1} parent=1 // pred_region
      _
    $region53: #{tpu_custom_call.1} parent=1 // pred_fallthru
      _
    // Predicated region
    $region54: #{tpu_custom_call.1} parent=1 // pred_check
      _
    $region55: #{tpu_custom_call.1} parent=1 // pred_check_branch
      %115 = sbr.rel (0) target = $region57
    $region56: #{tpu_custom_call.1} parent=1 // pred_region
      %117 = dma.done [#allocation3], 128
    $region57: #{tpu_custom_call.1} parent=1 // pred_fallthru
      _
    // Predicated region
    $region58: #{tpu_custom_call.1} parent=1 // pred_check
      _
    $region59: #{tpu_custom_call.1} parent=1 // pred_check_branch
      %119 = sbr.rel (0) target = $region61
    $region60: #{tpu_custom_call.1} parent=1 // pred_region
      %121 = dma.done [#allocation6], 128
    $region61: #{tpu_custom_call.1} parent=1 // pred_fallthru
      _
    // Predicated region
    $region62: #{tpu_custom_call.1} parent=1 // pred_check
      _
    $region63: #{tpu_custom_call.1} parent=1 // pred_check_branch
      %123 = sbr.rel (0) target = $region65
    $region64: #{tpu_custom_call.1} parent=1 // pred_region
      %125 = dma.done [#allocation6], 384
    $region65: #{tpu_custom_call.1} parent=1 // pred_fallthru
      _
    // Predicated region
    $region66: #{tpu_custom_call.1} parent=1 // pred_check
      _
    $region67: #{tpu_custom_call.1} parent=1 // pred_check_branch
      %127 = sbr.rel (0) target = $region69
    $region68: #{tpu_custom_call.1} parent=1 // pred_region
      %129 = dma.done [#allocation9], 128
    $region69: #{tpu_custom_call.1} parent=1 // pred_fallthru
      _
    // Predicated region
    $region70: #{tpu_custom_call.1} parent=1 // pred_check
      _
    $region71: #{tpu_custom_call.1} parent=1 // pred_check_branch
      %131 = sbr.rel (0) target = $region73
    $region72: #{tpu_custom_call.1} parent=1 // pred_region
      %133 = dma.done [#allocation9], 64
    $region73: #{tpu_custom_call.1} parent=1 // pred_fallthru
      _
    // Predicated region
    $region74: #{tpu_custom_call.1} parent=1 // pred_check
      _
    $region75: #{tpu_custom_call.1} parent=1 // pred_check_branch
      %135 = sbr.rel (0) target = $region77
    $region76: #{tpu_custom_call.1} parent=1 // pred_region
      %137 = dma.done [#allocation12], 64
    $region77: #{tpu_custom_call.1} parent=1 // pred_fallthru
      _
    // Predicated region
    $region78: #{tpu_custom_call.1} parent=1 // pred_check
      _
    $region79: #{tpu_custom_call.1} parent=1 // pred_check_branch
      %139 = sbr.rel (0) target = $region81
    $region80: #{tpu_custom_call.1} parent=1 // pred_region
      %141 = dma.done [#allocation12], 16
    $region81: #{tpu_custom_call.1} parent=1 // pred_fallthru
      _
    %v143 = vld [vmem:[#allocation2] sm:$0xff]
    %v144 = vld [vmem:[#allocation5] sm:$0xff]
    %v145 = vld [vmem:[#allocation7] sm:$0xff]
    %v146 = vld [vmem:[#allocation7 + $0x8] sm:$0xff]
    %v147 = vld [vmem:[#allocation7 + $0x10] sm:$0xff]
    %v148 = vld [vmem:[#allocation8] sm:$0xff]
    %vm149 = vcmask 64512
    %v151 = vsel %vm149, %v144, 0
    %153 = vmatpush.msra.mxu0 0.0
    %154 = vmatpush.msra.mxu0 0.0
    %155 = vmatpush.msra.mxu0 0.0
    %156 = vmatpush.msra.mxu0 0.0
    %157 = vmatpush.msra.mxu0 0.0
    %158 = vmatpush.msra.mxu0 0.0
    %159 = vmatpush.msra.mxu0 0.0
    %160 = vmatpush.msra.mxu0 0.0
    %161 = vmatpush.msra.mxu0 0.0
    %162 = vmatpush.msra.mxu0 0.0
    %163 = vmatpush.msra.mxu0 0.0
    %164 = vmatpush.msra.mxu0 0.0
    %165 = vmatpush.msra.mxu0 0.0
    %166 = vmatpush.msra.mxu0 0.0
    %167 = vmatpush.msra.mxu0 0.0
    %168 = vmatpush.msra.mxu0 %v148
    %169 = vmatmul.f32.gmra.mxu0 %v151
    %v170 = vpop.f32.mrf.mxu0
    %v171 = vadd.f32 0.0, %v170
    %172 = vdwg.mxu0
    %vm173 = vcmask 195584
    %v175 = vsel %vm173, %v143, 0
    %177 = vmatpush.msra.mxu0 0.0
    %178 = vmatpush.msra.mxu0 0.0
    %179 = vmatpush.msra.mxu0 0.0
    %180 = vmatpush.msra.mxu0 0.0
    %181 = vmatpush.msra.mxu0 0.0
    %182 = vmatpush.msra.mxu0 0.0
    %183 = vmatpush.msra.mxu0 0.0
    %184 = vmatpush.msra.mxu0 0.0
    %185 = vmatpush.msra.mxu0 0.0
    %186 = vmatpush.msra.mxu0 0.0
    %187 = vmatpush.msra.mxu0 0.0
    %188 = vmatpush.msra.mxu0 0.0
    %189 = vmatpush.msra.mxu0 0.0
    %190 = vmatpush.msra.mxu0 %v147
    %191 = vmatpush.msra.mxu0 %v146
    %192 = vmatpush.msra.mxu0 %v145
    %193 = vmatmul.f32.gmra.mxu0 %v175
    %v194 = vpop.f32.mrf.mxu0
    %v195 = vadd.f32 %v171, %v194
    %196 = vdwg.mxu0
    %v197 = vpack.c.bf16 %v143, %v143
    %v198 = vpack.c.bf16 %v144, %v144
    %v199 = vld [vmem:[%s4] sm:$0xf]
    %v200 = vld [vmem:[%s4 + $0x4] sm:$0xf]
    %v201 = vld [vmem:[%s4 + $0x8] sm:$0xf]
    %v202 = vld [vmem:[#allocation10] sm:$0xf]
    %v204 = vsel %vm149, %v198, 0
    %vm206 = vcmask 1043456
    %v208 = vsel %vm206, %v202, 0
    %210 = vmatpush.bf16.msra.mxu0 0
    %211 = vmatpush.bf16.msra.mxu0 0
    %212 = vmatpush.bf16.msra.mxu0 0
    %213 = vmatpush.bf16.msra.mxu0 0
    %214 = vmatpush.bf16.msra.mxu0 0
    %215 = vmatpush.bf16.msra.mxu0 0
    %216 = vmatpush.bf16.msra.mxu0 0
    %217 = vmatpush.bf16.msra.mxu0 %v208
    %218 = vmatmul.bf16.gmra.mxu0 %v204
    %v219 = vpop.f32.mrf.mxu0
    %v220 = vadd.f32 0.0, %v219
    %v221 = vpop.f32.mrf.mxu0
    %222 = vdwg.mxu0
    %v226 = vunpack.c.l.b16 %v199
    %v227 = vunpack.c.l.b16 %v200
    %v228 = vunpack.c.l.b16 %v201
    %v229 = vpack.c.b16 %v227, %v226
    %v230 = vpack.c.b16 %v228, %v228
    %v233 = vsel %vm173, %v197, 0
    %v236 = vsel %vm206, %v230, 0
    %238 = vmatpush.bf16.msra.mxu0 0
    %239 = vmatpush.bf16.msra.mxu0 0
    %240 = vmatpush.bf16.msra.mxu0 0
    %241 = vmatpush.bf16.msra.mxu0 0
    %242 = vmatpush.bf16.msra.mxu0 0
    %243 = vmatpush.bf16.msra.mxu0 0
    %244 = vmatpush.bf16.msra.mxu0 %v236
    %245 = vmatpush.bf16.msra.mxu0 %v229
    %246 = vmatmul.bf16.gmra.mxu0 %v233
    %v247 = vpop.f32.mrf.mxu0
    %v248 = vadd.f32 %v220, %v247
    %v249 = vpop.f32.mrf.mxu0
    %250 = vdwg.mxu0
    %v251 = vld [vmem:[%s6] sm:$0x1]
    %v253 = vperm.slane %v251, 0
    %v255 = vadd.f32 %v248, %v253
    %v256 = vmax.f32 %v255, 0.0
    %v257 = vpack.c.bf16 %v256, %v256
    %v258 = vld [vmem:[%s7] sm:$0xf]
    %v259 = vld [vmem:[%s7 + $0x4] sm:$0xf]
    %v260 = vld [vmem:[%s7 + $0x8] sm:$0xf]
    %v261 = vld [vmem:[%s7 + $0xc] sm:$0xf]
    %v262 = vld [vmem:[%s8] sm:$0x1]
    %v264 = vperm.slane %v262, 0
    %v270 = vunpack.c.l.b16 %v258
    %v271 = vunpack.c.l.b16 %v259
    %v272 = vunpack.c.l.b16 %v260
    %v273 = vunpack.c.l.b16 %v261
    %v274 = vpack.c.b16 %v271, %v270
    %v275 = vpack.c.b16 %v273, %v272
    %vm278 = vcmask 261120
    %v280 = vsel %vm278, %v257, 0
    %282 = vmatpush.bf16.msra.mxu0 0
    %283 = vmatpush.bf16.msra.mxu0 0
    %284 = vmatpush.bf16.msra.mxu0 0
    %285 = vmatpush.bf16.msra.mxu0 0
    %286 = vmatpush.bf16.msra.mxu0 0
    %287 = vmatpush.bf16.msra.mxu0 0
    %288 = vmatpush.bf16.msra.mxu0 %v275
    %289 = vmatpush.bf16.msra.mxu0 %v274
    %290 = vmatmul.bf16.gmra.mxu0 %v280
    %v291 = vpop.f32.mrf.mxu0
    %v292 = vadd.f32 %v264, %v291
    %v293 = vpop.f32.mrf.mxu0
    %294 = vdwg.mxu0
    %v295 = vmax.f32 %v292, 0.0
    %v296 = vpack.c.bf16 %v295, %v295
    %v297 = vld [vmem:[#allocation11] sm:$0xf]
    %v298 = vld [vmem:[#allocation13] sm:$0x1]
    %v300 = vperm.slane %v298, 0
    %v303 = vsel %vm149, %v296, 0
    %v306 = vsel %vm206, %v297, 0
    %308 = vmatpush.bf16.msra.mxu0 0
    %309 = vmatpush.bf16.msra.mxu0 0
    %310 = vmatpush.bf16.msra.mxu0 0
    %311 = vmatpush.bf16.msra.mxu0 0
    %312 = vmatpush.bf16.msra.mxu0 0
    %313 = vmatpush.bf16.msra.mxu0 0
    %314 = vmatpush.bf16.msra.mxu0 0
    %315 = vmatpush.bf16.msra.mxu0 %v306
    %316 = vmatmul.bf16.gmra.mxu0 %v303
    %v317 = vpop.f32.mrf.mxu0
    %v318 = vadd.f32 %v300, %v317
    %v319 = vpop.f32.mrf.mxu0
    %320 = vdwg.mxu0
    %v321 = vmax.f32 %v318, 0.0
    %v322 = vpack.c.bf16 %v321, %v321
    %v323 = vld [vmem:[%s11] sm:$0xf]
    %v324 = vld [vmem:[%s11 + $0x4] sm:$0xf]
    %v325 = vld [vmem:[%s11 + $0x8] sm:$0xf]
    %v326 = vld [vmem:[%s11 + $0xc] sm:$0xf]
    %v327 = vld [vmem:[%s12] sm:$0x1]
    %v329 = vperm.slane %v327, 0
    %v335 = vunpack.c.l.b16 %v323
    %v336 = vunpack.c.l.b16 %v324
    %v337 = vunpack.c.l.b16 %v325
    %v338 = vunpack.c.l.b16 %v326
    %v339 = vpack.c.b16 %v336, %v335
    %v340 = vpack.c.b16 %v338, %v337
    %v344 = vsel %vm278, %v322, 0
    %346 = vmatpush.bf16.msra.mxu0 0
    %347 = vmatpush.bf16.msra.mxu0 0
    %348 = vmatpush.bf16.msra.mxu0 0
    %349 = vmatpush.bf16.msra.mxu0 0
    %350 = vmatpush.bf16.msra.mxu0 0
    %351 = vmatpush.bf16.msra.mxu0 0
    %352 = vmatpush.bf16.msra.mxu0 %v340
    %353 = vmatpush.bf16.msra.mxu0 %v339
    %354 = vmatmul.bf16.gmra.mxu0 %v344
    %v355 = vpop.f32.mrf.mxu0
    %v356 = vadd.f32 %v329, %v355
    %v357 = vpop.f32.mrf.mxu0
    %358 = vdwg.mxu0
    %v359 = vmul.f32 %v356, 0.5
    %v360 = vtanh.pop %v359
    %v361 = vadd.f32 %v360, 1.0
    %v362 = vmul.f32 %v361, 0.5
    %v363 = vmul.f32 %v195, %v362
    %364 = vst.msk [vmem:[#allocation14] sm:$0xff] %vm278, %v363
    // Predicated region
    $region82: #{tpu_custom_call.1} parent=1 // pred_check
      _
    $region83: #{tpu_custom_call.1} parent=1 // pred_check_branch
      %366 = sbr.rel (0) target = $region85
    $region84: #{tpu_custom_call.1} parent=1 // pred_region
      %368 = vsyncadd [#allocation4], 0
      %s370 = sshll.u32 [#allocation14], 4
      %s371 = int_to_ptr.vmem [resolvable:$true] %s370
      %s372 = sshll.u32 %s13, 4
      %s373 = int_to_ptr.hbm [resolvable:$true] %s372
      %375 = dma.vmem_to_hbm [thread:$0]  %s371, 128, %s373, [#allocation4]
    $region85: #{tpu_custom_call.1} parent=1 // pred_fallthru
      _
    // Predicated region
    $region86: #{tpu_custom_call.1} parent=1 // pred_check
      _
    $region87: #{tpu_custom_call.1} parent=1 // pred_check_branch
      %377 = sbr.rel (0) target = $region89
    $region88: #{tpu_custom_call.1} parent=1 // pred_region
      %379 = dma.done [#allocation4], 128
    $region89: #{tpu_custom_call.1} parent=1 // pred_fallthru
      _
    %380 = vsyncpa [#allocation3], 1
    %381 = vsyncpa [#allocation6], 1
    %382 = vsyncpa [#allocation9], 1
    %383 = vsyncpa [#allocation12], 1
    %384 = vsyncpa [#allocation4], 1

</llo_original>
